<compile_context>
chip_gen: v7x
topology: tpu7x:2x2x1
jax: 0.10.0
libtpu: 0.0.40
codegen_flags: <defaults>
</compile_context>

<pallas_src>
import jax
import jax.numpy as jnp
from jax import lax
from jax.experimental import pallas as pl
from jax.experimental.pallas import tpu as pltpu


def qnet_kernel(x_ref, w1_ref, b1_ref, w2_ref, b2_ref, w3_ref, b3_ref, o_ref):
    # x_ref: (TB, n_states) f32 (natural layout; cast to bf16 in-VMEM)
    # w*_ref: (out, in) bf16    b*_ref: (out, 1) f32    o_ref: (n_out_pad, TB) f32
    x = x_ref[...].astype(jnp.bfloat16)
    # Layer 1: W1 @ X^T via dot_general (contract both last dims) so the
    # transpose happens in-VMEM instead of as a separate wrapper-side HBM pass.
    h1 = lax.dot_general(
        w1_ref[...], x,
        dimension_numbers=(((1,), (1,)), ((), ())),
        preferred_element_type=jnp.float32,
    ) + b1_ref[...]
    h1 = jnp.maximum(h1, 0.0).astype(jnp.bfloat16)
    h2 = jnp.dot(w2_ref[...], h1, preferred_element_type=jnp.float32) + b2_ref[...]
    h2 = jnp.maximum(h2, 0.0).astype(jnp.bfloat16)
    out = jnp.dot(w3_ref[...], h2, preferred_element_type=jnp.float32) + b3_ref[...]
    o_ref[...] = out.astype(o_ref.dtype)


def _round_up(a, m):
    return (a + m - 1) // m * m


def _choose_batch_tile(B, max_tb=4096):
    """Batch tile: multiple of 128, <= 4096 (v5e-safe VMEM), >=2 grid steps
    when the batch allows it (v7x megacore sharding of the parallel axis)."""
    b_lane = _round_up(B, 128)
    if b_lane <= 128:
        return 128
    half = _round_up(pl.cdiv(b_lane, 2), 128)
    return min(max_tb, half)


def qnet_forward(x, params):
    """x: (B, n_states) float32. params: PyTorch-convention weights.

    params["w1"]: (n_hidden, n_states), params["b1"]: (n_hidden,)
    params["w2"]: (n_hidden, n_hidden), params["b2"]: (n_hidden,)
    params["w3"]: (n_actions, n_hidden), params["b3"]: (n_actions,)
    Returns (B, n_actions) float32.
    """
    w1, b1 = params["w1"], params["b1"]
    w2, b2 = params["w2"], params["b2"]
    w3, b3 = params["w3"], params["b3"]
    B, n_states = x.shape
    n_hidden = w1.shape[0]
    n_actions = w3.shape[0]
    n_out = _round_up(n_actions, 8)          # full-sublane output tile

    tb = _choose_batch_tile(B)
    grid = (pl.cdiv(B, tb),)
    b_pad = grid[0] * tb                     # output padded so every store is full-tile

    # bf16 weights for the MXU; f32 biases as (out, 1) columns.
    # w3/b3 are zero-padded to n_out rows (padded rows -> harmless zero outputs,
    # sliced off below).  These are tiny one-off ops.
    w1b = w1.astype(jnp.bfloat16)
    w2b = w2.astype(jnp.bfloat16)
    w3b = jnp.pad(w3.astype(jnp.bfloat16), ((0, n_out - n_actions), (0, 0)))
    b1c = b1.reshape(n_hidden, 1).astype(jnp.float32)
    b2c = b2.reshape(n_hidden, 1).astype(jnp.float32)
    b3c = jnp.pad(b3.astype(jnp.float32), (0, n_out - n_actions)).reshape(n_out, 1)

    # Constant index_map -> weights/biases stay VMEM-resident across grid steps.
    resident = lambda a: pl.BlockSpec(a.shape, lambda i: (0, 0))

    out_t = pl.pallas_call(
        qnet_kernel,
        out_shape=jax.ShapeDtypeStruct((n_out, b_pad), jnp.float32),
        grid=grid,
        in_specs=[
            pl.BlockSpec((tb, n_states), lambda i: (i, 0)),  # x tile, natural layout
            resident(w1b), resident(b1c),
            resident(w2b), resident(b2c),
            resident(w3b), resident(b3c),
        ],
        out_specs=pl.BlockSpec((n_out, tb), lambda i: (0, i)),
        compiler_params=pltpu.CompilerParams(
            dimension_semantics=("parallel",),
        ),
    )(x, w1b, b1c, w2b, b2c, w3b, b3c)

    # Drop the sublane padding rows and any batch padding columns, back to (B, n_actions).
    return out_t[:n_actions, :B].T


def init_qnet_params(key, n_states, n_actions, n_hidden=64):
    """PyTorch nn.Linear default init (uniform +-1/sqrt(fan_in)), native layout."""
    ks = jax.random.split(key, 6)

    def linear(kw, kb, fan_in, fan_out):
        bound = 1.0 / jnp.sqrt(jnp.float32(fan_in))
        w = jax.random.uniform(kw, (fan_out, fan_in), jnp.float32, -bound, bound)
        b = jax.random.uniform(kb, (fan_out,), jnp.float32, -bound, bound)
        return w, b

    w1, b1 = linear(ks[0], ks[1], n_states, n_hidden)
    w2, b2 = linear(ks[2], ks[3], n_hidden, n_hidden)
    w3, b3 = linear(ks[4], ks[5], n_hidden, n_actions)
    return {"w1": w1, "b1": b1, "w2": w2, "b2": b2, "w3": w3, "b3": b3}


def qnet_reference(x, p):
    """Reference with the same bf16-input / f32-accumulate precision as the kernel."""
    q = lambda a: a.astype(jnp.bfloat16)
    f32 = jnp.float32
    h1 = jnp.maximum(jnp.dot(q(x), q(p["w1"]).T, preferred_element_type=f32) + p["b1"], 0.0)
    h2 = jnp.maximum(jnp.dot(q(h1), q(p["w2"]).T, preferred_element_type=f32) + p["b2"], 0.0)
    return jnp.dot(q(h2), q(p["w3"]).T, preferred_element_type=f32) + p["b3"]


if __name__ == "__main__":
    key = jax.random.PRNGKey(0)
    n_states, n_actions, n_hidden = 8, 4, 64

    k_x, k_x2, k_p = jax.random.split(key, 3)
    params = init_qnet_params(k_p, n_states, n_actions, n_hidden)

    # Small batch: single grid step.
    x = jax.random.normal(k_x, (8, n_states), dtype=jnp.float32)
    out = jax.block_until_ready(qnet_forward(x, params))
    ref = qnet_reference(x, params)
    assert out.shape == (8, n_actions)
    assert jnp.allclose(out, ref, atol=1e-3, rtol=1e-3), "mismatch vs reference (B=8)"

    # Larger batch: exercises the 2-step grid and the partial last block (no jnp.pad).
    x2 = jax.random.normal(k_x2, (300, n_states), dtype=jnp.float32)
    out2 = jax.block_until_ready(qnet_forward(x2, params))
    ref2 = qnet_reference(x2, params)
    assert out2.shape == (300, n_actions)
    assert jnp.allclose(out2, ref2, atol=1e-3, rtol=1e-3), "mismatch vs reference (B=300)"

    print("KERNEL_OK")
</pallas_src>

<mosaic_0001>
module attributes {stable_mosaic.version = 11 : i64} {
  func.func @qnet_kernel(%arg0: i32, %arg1: memref<128x8xf32, #tpu.memory_space<vmem>>, %arg2: memref<64x8xbf16, #tpu.memory_space<vmem>>, %arg3: memref<64x1xf32, #tpu.memory_space<vmem>>, %arg4: memref<64x64xbf16, #tpu.memory_space<vmem>>, %arg5: memref<64x1xf32, #tpu.memory_space<vmem>>, %arg6: memref<8x64xbf16, #tpu.memory_space<vmem>>, %arg7: memref<8x1xf32, #tpu.memory_space<vmem>>, %arg8: memref<8x128xf32, #tpu.memory_space<vmem>>) attributes {dimension_semantics = [#tpu.dimension_semantics<parallel>], iteration_bounds = array<i64: 1>, scalar_prefetch = 0 : i64, scratch_operands = 0 : i64, tpu.core_type = #tpu.core_type<tc>, window_params = [{transform_indices = @transform_0, window_bounds = array<i64: 128, 8>}, {pipeline_mode = #tpu.pipeline_mode<synchronous>, transform_indices = @transform_1, window_bounds = array<i64: 64, 8>}, {pipeline_mode = #tpu.pipeline_mode<synchronous>, transform_indices = @transform_2, window_bounds = array<i64: 64, 1>}, {pipeline_mode = #tpu.pipeline_mode<synchronous>, transform_indices = @transform_3, window_bounds = array<i64: 64, 64>}, {pipeline_mode = #tpu.pipeline_mode<synchronous>, transform_indices = @transform_4, window_bounds = array<i64: 64, 1>}, {pipeline_mode = #tpu.pipeline_mode<synchronous>, transform_indices = @transform_5, window_bounds = array<i64: 8, 64>}, {pipeline_mode = #tpu.pipeline_mode<synchronous>, transform_indices = @transform_6, window_bounds = array<i64: 8, 1>}, {transform_indices = @transform_7, window_bounds = array<i64: 8, 128>}]} {
    %c0 = arith.constant 0 : index
    %c0_0 = arith.constant 0 : index
    %0 = vector.load %arg1[%c0, %c0_0] : memref<128x8xf32, #tpu.memory_space<vmem>>, vector<128x8xf32>
    %1 = arith.truncf %0 : vector<128x8xf32> to vector<128x8xbf16>
    %c0_1 = arith.constant 0 : index
    %c0_2 = arith.constant 0 : index
    %2 = vector.load %arg2[%c0_1, %c0_2] : memref<64x8xbf16, #tpu.memory_space<vmem>>, vector<64x8xbf16>
    %cst = arith.constant dense<0.000000e+00> : vector<64x128xf32>
    %3 = tpu.matmul %2, %1, %cst {dimension_numbers = #tpu.dot_dimension_numbers<[1], [1], [0], [0], [0, 0, 1, 0], [], []>} : vector<64x8xbf16>, vector<128x8xbf16>, vector<64x128xf32> -> vector<64x128xf32>
    %c0_3 = arith.constant 0 : index
    %c0_4 = arith.constant 0 : index
    %4 = vector.load %arg3[%c0_3, %c0_4] : memref<64x1xf32, #tpu.memory_space<vmem>>, vector<64x1xf32>
    %5 = vector.broadcast %4 : vector<64x1xf32> to vector<64x128xf32>
    %6 = arith.addf %3, %5 : vector<64x128xf32>
    %cst_5 = arith.constant 0.000000e+00 : f32
    %7 = vector.broadcast %cst_5 : f32 to vector<64x128xf32>
    %8 = arith.maximumf %6, %7 : vector<64x128xf32>
    %9 = arith.truncf %8 : vector<64x128xf32> to vector<64x128xbf16>
    %c0_6 = arith.constant 0 : index
    %c0_7 = arith.constant 0 : index
    %10 = vector.load %arg4[%c0_6, %c0_7] : memref<64x64xbf16, #tpu.memory_space<vmem>>, vector<64x64xbf16>
    %cst_8 = arith.constant dense<0.000000e+00> : vector<64x128xf32>
    %11 = tpu.matmul %10, %9, %cst_8 {dimension_numbers = #tpu.dot_dimension_numbers<[1], [0], [0], [1], [0, 0, 1, 1], [], []>} : vector<64x64xbf16>, vector<64x128xbf16>, vector<64x128xf32> -> vector<64x128xf32>
    %c0_9 = arith.constant 0 : index
    %c0_10 = arith.constant 0 : index
    %12 = vector.load %arg5[%c0_9, %c0_10] : memref<64x1xf32, #tpu.memory_space<vmem>>, vector<64x1xf32>
    %13 = vector.broadcast %12 : vector<64x1xf32> to vector<64x128xf32>
    %14 = arith.addf %11, %13 : vector<64x128xf32>
    %cst_11 = arith.constant 0.000000e+00 : f32
    %15 = vector.broadcast %cst_11 : f32 to vector<64x128xf32>
    %16 = arith.maximumf %14, %15 : vector<64x128xf32>
    %17 = arith.truncf %16 : vector<64x128xf32> to vector<64x128xbf16>
    %c0_12 = arith.constant 0 : index
    %c0_13 = arith.constant 0 : index
    %18 = vector.load %arg6[%c0_12, %c0_13] : memref<8x64xbf16, #tpu.memory_space<vmem>>, vector<8x64xbf16>
    %cst_14 = arith.constant dense<0.000000e+00> : vector<8x128xf32>
    %19 = tpu.matmul %18, %17, %cst_14 {dimension_numbers = #tpu.dot_dimension_numbers<[1], [0], [0], [1], [0, 0, 1, 1], [], []>} : vector<8x64xbf16>, vector<64x128xbf16>, vector<8x128xf32> -> vector<8x128xf32>
    %c0_15 = arith.constant 0 : index
    %c0_16 = arith.constant 0 : index
    %20 = vector.load %arg7[%c0_15, %c0_16] : memref<8x1xf32, #tpu.memory_space<vmem>>, vector<8x1xf32>
    %21 = vector.broadcast %20 : vector<8x1xf32> to vector<8x128xf32>
    %22 = arith.addf %19, %21 : vector<8x128xf32>
    %c0_17 = arith.constant 0 : index
    %c0_18 = arith.constant 0 : index
    %23 = vector.load %arg8[%c0_17, %c0_18] : memref<8x128xf32, #tpu.memory_space<vmem>>, vector<8x128xf32>
    tpu.vector_store %arg8[%c0_17, %c0_18], %22 {strides = array<i32>} : memref<8x128xf32, #tpu.memory_space<vmem>>, vector<8x128xf32>,
    return
  }
  func.func @transform_0(%arg0: i32) -> (i32, i32) {
    %c0_i32 = arith.constant 0 : i32
    %c0_i32_0 = arith.constant 0 : i32
    return %arg0, %c0_i32 : i32, i32
  }
  func.func @transform_1(%arg0: i32) -> (i32, i32) {
    %c0_i32 = arith.constant 0 : i32
    %c0_i32_0 = arith.constant 0 : i32
    %c0_i32_1 = arith.constant 0 : i32
    return %c0_i32, %c0_i32_0 : i32, i32
  }
  func.func @transform_2(%arg0: i32) -> (i32, i32) {
    %c0_i32 = arith.constant 0 : i32
    %c0_i32_0 = arith.constant 0 : i32
    %c0_i32_1 = arith.constant 0 : i32
    return %c0_i32, %c0_i32_0 : i32, i32
  }
  func.func @transform_3(%arg0: i32) -> (i32, i32) {
    %c0_i32 = arith.constant 0 : i32
    %c0_i32_0 = arith.constant 0 : i32
    %c0_i32_1 = arith.constant 0 : i32
    return %c0_i32, %c0_i32_0 : i32, i32
  }
  func.func @transform_4(%arg0: i32) -> (i32, i32) {
    %c0_i32 = arith.constant 0 : i32
    %c0_i32_0 = arith.constant 0 : i32
    %c0_i32_1 = arith.constant 0 : i32
    return %c0_i32, %c0_i32_0 : i32, i32
  }
  func.func @transform_5(%arg0: i32) -> (i32, i32) {
    %c0_i32 = arith.constant 0 : i32
    %c0_i32_0 = arith.constant 0 : i32
    %c0_i32_1 = arith.constant 0 : i32
    return %c0_i32, %c0_i32_0 : i32, i32
  }
  func.func @transform_6(%arg0: i32) -> (i32, i32) {
    %c0_i32 = arith.constant 0 : i32
    %c0_i32_0 = arith.constant 0 : i32
    %c0_i32_1 = arith.constant 0 : i32
    return %c0_i32, %c0_i32_0 : i32, i32
  }
  func.func @transform_7(%arg0: i32) -> (i32, i32) {
    %c0_i32 = arith.constant 0 : i32
    %c0_i32_0 = arith.constant 0 : i32
    return %c0_i32, %arg0 : i32, i32
  }
}

</mosaic_0001>

<llo_original>
// kernel: tpu_custom_call.1
$region0: #{tpu_custom_call.1}
  #allocation0 [shape = 'u32[]', space=smem, size = 0x4, offset = 0x4, fixed_abs, tag = 'smem constant byte address 0x4 - core index']
  #allocation1 [shape = 'u32[144,128]{1,0:T(1,128)}', space=vmem, size = 0x12000, scoped, tag = 'internal scratch']
  %s0 = inlined_call_operand.vmem [shape: f32[8,8], index: 0, kind: input, shape index: {}]
  %s1 = inlined_call_operand.vmem [shape: bf16[64,8], index: 1, kind: input, shape index: {}]
  %s2 = inlined_call_operand.vmem [shape: f32[64,1], index: 2, kind: input, shape index: {}]
  %s3 = inlined_call_operand.vmem [shape: bf16[64,64], index: 3, kind: input, shape index: {}]
  %s4 = inlined_call_operand.vmem [shape: f32[64,1], index: 4, kind: input, shape index: {}]
  %s5 = inlined_call_operand.vmem [shape: bf16[8,64], index: 5, kind: input, shape index: {}]
  %s6 = inlined_call_operand.vmem [shape: f32[8,1], index: 6, kind: input, shape index: {}]
  %s7 = inlined_call_operand.hbm [shape: f32[8,128], index: 7, kind: output, shape index: {}]
  %s8 = sld [smem:[#allocation0]]
  $region38: #{tpu_custom_call.1} parent=0
    _
  %s10 = ssub.s32 1, %s8
  %s11 = scalar_select 0, %s10, %s8
  $region1: #{tpu_custom_call.1} parent=0
    #allocation2 [shape = 'u8[4096]{0}', space=vmem, size = 0x1000, scoped, tag = 'output window, operand 0, single buffered']
    #allocation3 [shape = 's32[1]{0}', space=sflag, size = 0x4, scoped, tag = 'scoped memory for tpu_custom_call.1']
    %12 = vsyncpa [#allocation3], 0
    // Predicated region
    $region2: #{tpu_custom_call.1} parent=1 // pred_check
      _
    $region3: #{tpu_custom_call.1} parent=1 // pred_check_branch
      %14 = sbr.rel (0) target = $region5
    $region4: #{tpu_custom_call.1} parent=1 // pred_region
      _
    $region5: #{tpu_custom_call.1} parent=1 // pred_fallthru
      _
    // Predicated region
    $region6: #{tpu_custom_call.1} parent=1 // pred_check
      _
    $region7: #{tpu_custom_call.1} parent=1 // pred_check_branch
      %16 = sbr.rel (0) target = $region9
    $region8: #{tpu_custom_call.1} parent=1 // pred_region
      _
    $region9: #{tpu_custom_call.1} parent=1 // pred_fallthru
      _
    // Predicated region
    $region10: #{tpu_custom_call.1} parent=1 // pred_check
      _
    $region11: #{tpu_custom_call.1} parent=1 // pred_check_branch
      %18 = sbr.rel (0) target = $region13
    $region12: #{tpu_custom_call.1} parent=1 // pred_region
      _
    $region13: #{tpu_custom_call.1} parent=1 // pred_fallthru
      _
    // Predicated region
    $region14: #{tpu_custom_call.1} parent=1 // pred_check
      _
    $region15: #{tpu_custom_call.1} parent=1 // pred_check_branch
      %20 = sbr.rel (0) target = $region17
    $region16: #{tpu_custom_call.1} parent=1 // pred_region
      _
    $region17: #{tpu_custom_call.1} parent=1 // pred_fallthru
      _
    // Predicated region
    $region18: #{tpu_custom_call.1} parent=1 // pred_check
      _
    $region19: #{tpu_custom_call.1} parent=1 // pred_check_branch
      %22 = sbr.rel (0) target = $region21
    $region20: #{tpu_custom_call.1} parent=1 // pred_region
      _
    $region21: #{tpu_custom_call.1} parent=1 // pred_fallthru
      _
    // Predicated region
    $region22: #{tpu_custom_call.1} parent=1 // pred_check
      _
    $region23: #{tpu_custom_call.1} parent=1 // pred_check_branch
      %24 = sbr.rel (0) target = $region25
    $region24: #{tpu_custom_call.1} parent=1 // pred_region
      _
    $region25: #{tpu_custom_call.1} parent=1 // pred_fallthru
      _
    // Predicated region
    $region26: #{tpu_custom_call.1} parent=1 // pred_check
      _
    $region27: #{tpu_custom_call.1} parent=1 // pred_check_branch
      %26 = sbr.rel (0) target = $region29
    $region28: #{tpu_custom_call.1} parent=1 // pred_region
      _
    $region29: #{tpu_custom_call.1} parent=1 // pred_fallthru
      _
    %v28 = vld [vmem:[%s0] sm:$0xff]
    %v29 = vld [vmem:[%s0 + $0x8] sm:$0xff]
    %v30 = vld [vmem:[%s0 + $0x10] sm:$0xff]
    %v31 = vld [vmem:[%s0 + $0x18] sm:$0xff]
    %v32 = vld [vmem:[%s0 + $0x20] sm:$0xff]
    %v33 = vld [vmem:[%s0 + $0x28] sm:$0xff]
    %v34 = vld [vmem:[%s0 + $0x30] sm:$0xff]
    %v35 = vld [vmem:[%s0 + $0x38] sm:$0xff]
    %v36 = vld [vmem:[%s0 + $0x40] sm:$0xff]
    %v37 = vld [vmem:[%s0 + $0x48] sm:$0xff]
    %v38 = vld [vmem:[%s0 + $0x50] sm:$0xff]
    %v39 = vld [vmem:[%s0 + $0x58] sm:$0xff]
    %v40 = vld [vmem:[%s0 + $0x60] sm:$0xff]
    %v41 = vld [vmem:[%s0 + $0x68] sm:$0xff]
    %v42 = vld [vmem:[%s0 + $0x70] sm:$0xff]
    %v43 = vld [vmem:[%s0 + $0x78] sm:$0xff]
    %v44 = vpack.c.bf16 %v29, %v28
    %v45 = vpack.c.bf16 %v31, %v30
    %v46 = vpack.c.bf16 %v33, %v32
    %v47 = vpack.c.bf16 %v35, %v34
    %v48 = vpack.c.bf16 %v37, %v36
    %v49 = vpack.c.bf16 %v39, %v38
    %v50 = vpack.c.bf16 %v41, %v40
    %v51 = vpack.c.bf16 %v43, %v42
    %v52 = vld [vmem:[%s1] sm:$0xf]
    %v53 = vld [vmem:[%s1 + $0x4] sm:$0xf]
    %v54 = vld [vmem:[%s1 + $0x8] sm:$0xf]
    %v55 = vld [vmem:[%s1 + $0xc] sm:$0xf]
    %v56 = vld [vmem:[%s1 + $0x10] sm:$0xf]
    %v57 = vld [vmem:[%s1 + $0x14] sm:$0xf]
    %v58 = vld [vmem:[%s1 + $0x18] sm:$0xf]
    %v59 = vld [vmem:[%s1 + $0x1c] sm:$0xf]
    %v60 = vld [vmem:[%s2] sm:$0xff]
    %v61 = vld [vmem:[%s2 + $0x8] sm:$0xff]
    %v62 = vld [vmem:[%s2 + $0x10] sm:$0xff]
    %v63 = vld [vmem:[%s2 + $0x18] sm:$0xff]
    %v64 = vld [vmem:[%s2 + $0x20] sm:$0xff]
    %v65 = vld [vmem:[%s2 + $0x28] sm:$0xff]
    %v66 = vld [vmem:[%s2 + $0x30] sm:$0xff]
    %v67 = vld [vmem:[%s2 + $0x38] sm:$0xff]
    %69 = vset.pattern.permute.xlu0 0
    %70 = vperm.xlu0 %69, %v60
    %v71 = vpop.permute.xlu0 %70
    %74 = vset.pattern.permute.xlu0 0
    %75 = vperm.xlu0 %74, %v61
    %v76 = vpop.permute.xlu0 %75
    %79 = vset.pattern.permute.xlu0 0
    %80 = vperm.xlu0 %79, %v62
    %v81 = vpop.permute.xlu0 %80
    %84 = vset.pattern.permute.xlu0 0
    %85 = vperm.xlu0 %84, %v63
    %v86 = vpop.permute.xlu0 %85
    %89 = vset.pattern.permute.xlu0 0
    %90 = vperm.xlu0 %89, %v64
    %v91 = vpop.permute.xlu0 %90
    %94 = vset.pattern.permute.xlu0 0
    %95 = vperm.xlu0 %94, %v65
    %v96 = vpop.permute.xlu0 %95
    %99 = vset.pattern.permute.xlu0 0
    %100 = vperm.xlu0 %99, %v66
    %v101 = vpop.permute.xlu0 %100
    %104 = vset.pattern.permute.xlu0 0
    %105 = vperm.xlu0 %104, %v67
    %v106 = vpop.permute.xlu0 %105
    %v116 = vunpack.c.l.b16 %v52
    %v117 = vunpack.c.l.b16 %v53
    %v118 = vunpack.c.l.b16 %v54
    %v119 = vunpack.c.l.b16 %v55
    %v120 = vunpack.c.l.b16 %v56
    %v121 = vunpack.c.l.b16 %v57
    %v122 = vunpack.c.l.b16 %v58
    %v123 = vunpack.c.l.b16 %v59
    %v124 = vpack.c.b16 %v117, %v116
    %v125 = vpack.c.b16 %v119, %v118
    %v126 = vpack.c.b16 %v121, %v120
    %v127 = vpack.c.b16 %v123, %v122
    %vm128 = vcmask 64512
    %v130 = vsel %vm128, %v124, 0
    %v133 = vsel %vm128, %v125, 0
    %v136 = vsel %vm128, %v126, 0
    %v139 = vsel %vm128, %v127, 0
    %v142 = vsel %vm128, %v44, 0
    %v145 = vsel %vm128, %v45, 0
    %v148 = vsel %vm128, %v46, 0
    %v151 = vsel %vm128, %v47, 0
    %v154 = vsel %vm128, %v48, 0
    %v157 = vsel %vm128, %v49, 0
    %v160 = vsel %vm128, %v50, 0
    %v163 = vsel %vm128, %v51, 0
    %165 = vmatprep.subr.bf16.mxu0 0
    %166 = vmatpush1.bf16.xpose.msra.mxu0 %v142
    %167 = vmatprep.subr.bf16.mxu0 0
    %168 = vmatpush1.bf16.xpose.msra.mxu0 %v145
    %169 = vmatprep.subr.bf16.mxu0 0
    %170 = vmatpush1.bf16.xpose.msra.mxu0 %v148
    %171 = vmatprep.subr.bf16.mxu0 0
    %172 = vmatpush1.bf16.xpose.msra.mxu0 %v151
    %173 = vmatprep.subr.bf16.mxu0 0
    %174 = vmatpush1.bf16.xpose.msra.mxu0 %v154
    %175 = vmatprep.subr.bf16.mxu0 0
    %176 = vmatpush1.bf16.xpose.msra.mxu0 %v157
    %177 = vmatprep.subr.bf16.mxu0 0
    %178 = vmatpush1.bf16.xpose.msra.mxu0 %v160
    %179 = vmatprep.subr.bf16.mxu0 0
    %180 = vmatpush1.bf16.xpose.msra.mxu0 %v163
    %181 = vmatprep.subr.bf16.mxu0 0
    %182 = vmatpush1.bf16.xpose.msra.mxu0 0
    %183 = vmatprep.subr.bf16.mxu0 0
    %184 = vmatpush1.bf16.xpose.msra.mxu0 0
    %185 = vmatprep.subr.bf16.mxu0 0
    %186 = vmatpush1.bf16.xpose.msra.mxu0 0
    %187 = vmatprep.subr.bf16.mxu0 0
    %188 = vmatpush1.bf16.xpose.msra.mxu0 0
    %189 = vmatprep.subr.bf16.mxu0 0
    %190 = vmatpush1.bf16.xpose.msra.mxu0 0
    %191 = vmatprep.subr.bf16.mxu0 0
    %192 = vmatpush1.bf16.xpose.msra.mxu0 0
    %193 = vmatprep.subr.bf16.mxu0 0
    %194 = vmatpush1.bf16.xpose.msra.mxu0 0
    %195 = vmatprep.subr.bf16.mxu0 0
    %196 = vmatpush1.bf16.xpose.msra.mxu0 0
    %197 = vmatprep.mubr.bf16.mxu0 0
    %198 = vmatmul.mubr.bf16.gmra.mrb[0].mxu0 %v130
    %v199 = vpop.f32.mrb[0].mxu0
    %v200 = vadd.f32 %v71, %v199
    %v201 = vpop.f32.mrb[0].mxu0
    %v202 = vpop.f32.mrb[0].mxu0
    %v203 = vadd.f32 %v76, %v202
    %v204 = vpop.f32.mrb[0].mxu0
    %205 = vmatprep.mubr.bf16.mxu0 0
    %206 = vmatmul.mubr.bf16.gmra.mrb[0].mxu0 %v133
    %v207 = vpop.f32.mrb[0].mxu0
    %v208 = vadd.f32 %v81, %v207
    %v209 = vpop.f32.mrb[0].mxu0
    %v210 = vpop.f32.mrb[0].mxu0
    %v211 = vadd.f32 %v86, %v210
    %v212 = vpop.f32.mrb[0].mxu0
    %213 = vmatprep.mubr.bf16.mxu0 0
    %214 = vmatmul.mubr.bf16.gmra.mrb[0].mxu0 %v136
    %v215 = vpop.f32.mrb[0].mxu0
    %v216 = vadd.f32 %v91, %v215
    %v217 = vpop.f32.mrb[0].mxu0
    %v218 = vpop.f32.mrb[0].mxu0
    %v219 = vadd.f32 %v96, %v218
    %v220 = vpop.f32.mrb[0].mxu0
    %221 = vmatprep.mubr.bf16.mxu0 0
    %222 = vmatmul.mubr.bf16.gmra.mrb[0].mxu0 %v139
    %v223 = vpop.f32.mrb[0].mxu0
    %v224 = vadd.f32 %v101, %v223
    %v225 = vpop.f32.mrb[0].mxu0
    %v226 = vpop.f32.mrb[0].mxu0
    %v227 = vadd.f32 %v106, %v226
    %v228 = vpop.f32.mrb[0].mxu0
    %229 = vdwg.mxu0
    %v230 = vmax.f32 %v200, 0.0
    %v231 = vmax.f32 %v203, 0.0
    %v232 = vmax.f32 %v208, 0.0
    %v233 = vmax.f32 %v211, 0.0
    %v234 = vmax.f32 %v216, 0.0
    %v235 = vmax.f32 %v219, 0.0
    %v236 = vmax.f32 %v224, 0.0
    %v237 = vmax.f32 %v227, 0.0
    %v238 = vpack.c.bf16 %v231, %v230
    %v239 = vpack.c.bf16 %v233, %v232
    %v240 = vpack.c.bf16 %v235, %v234
    %v241 = vpack.c.bf16 %v237, %v236
    %v242 = vld [vmem:[%s3] sm:$0xf]
    %v243 = vld [vmem:[%s3 + $0x4] sm:$0xf]
    %v244 = vld [vmem:[%s3 + $0x8] sm:$0xf]
    %v245 = vld [vmem:[%s3 + $0xc] sm:$0xf]
    %v246 = vld [vmem:[%s3 + $0x10] sm:$0xf]
    %v247 = vld [vmem:[%s3 + $0x14] sm:$0xf]
    %v248 = vld [vmem:[%s3 + $0x18] sm:$0xf]
    %v249 = vld [vmem:[%s3 + $0x1c] sm:$0xf]
    %v250 = vld [vmem:[%s4] sm:$0xff]
    %v251 = vld [vmem:[%s4 + $0x8] sm:$0xff]
    %v252 = vld [vmem:[%s4 + $0x10] sm:$0xff]
    %v253 = vld [vmem:[%s4 + $0x18] sm:$0xff]
    %v254 = vld [vmem:[%s4 + $0x20] sm:$0xff]
    %v255 = vld [vmem:[%s4 + $0x28] sm:$0xff]
    %v256 = vld [vmem:[%s4 + $0x30] sm:$0xff]
    %v257 = vld [vmem:[%s4 + $0x38] sm:$0xff]
    %259 = vset.pattern.permute.xlu0 0
    %260 = vperm.xlu0 %259, %v250
    %v261 = vpop.permute.xlu0 %260
    %264 = vset.pattern.permute.xlu0 0
    %265 = vperm.xlu0 %264, %v251
    %v266 = vpop.permute.xlu0 %265
    %269 = vset.pattern.permute.xlu0 0
    %270 = vperm.xlu0 %269, %v252
    %v271 = vpop.permute.xlu0 %270
    %274 = vset.pattern.permute.xlu0 0
    %275 = vperm.xlu0 %274, %v253
    %v276 = vpop.permute.xlu0 %275
    %279 = vset.pattern.permute.xlu0 0
    %280 = vperm.xlu0 %279, %v254
    %v281 = vpop.permute.xlu0 %280
    %284 = vset.pattern.permute.xlu0 0
    %285 = vperm.xlu0 %284, %v255
    %v286 = vpop.permute.xlu0 %285
    %289 = vset.pattern.permute.xlu0 0
    %290 = vperm.xlu0 %289, %v256
    %v291 = vpop.permute.xlu0 %290
    %294 = vset.pattern.permute.xlu0 0
    %295 = vperm.xlu0 %294, %v257
    %v296 = vpop.permute.xlu0 %295
    %v306 = vunpack.c.l.b16 %v242
    %v307 = vunpack.c.l.b16 %v243
    %v308 = vunpack.c.l.b16 %v244
    %v309 = vunpack.c.l.b16 %v245
    %v310 = vunpack.c.l.b16 %v246
    %v311 = vunpack.c.l.b16 %v247
    %v312 = vunpack.c.l.b16 %v248
    %v313 = vunpack.c.l.b16 %v249
    %v314 = vpack.c.b16 %v307, %v306
    %v315 = vpack.c.b16 %v309, %v308
    %v316 = vpack.c.b16 %v311, %v310
    %v317 = vpack.c.b16 %v313, %v312
    %vm318 = vcmask 523264
    %v320 = vsel %vm318, %v314, 0
    %v323 = vsel %vm318, %v315, 0
    %v326 = vsel %vm318, %v316, 0
    %v329 = vsel %vm318, %v317, 0
    %331 = vmatprep.subr.bf16.mxu0 0
    %332 = vmatpush1.bf16.msra.mxu0 %v238
    %333 = vmatprep.subr.bf16.mxu0 0
    %334 = vmatpush1.bf16.msra.mxu0 %v239
    %335 = vmatprep.subr.bf16.mxu0 0
    %336 = vmatpush1.bf16.msra.mxu0 %v240
    %337 = vmatprep.subr.bf16.mxu0 0
    %338 = vmatpush1.bf16.msra.mxu0 %v241
    %339 = vmatprep.subr.bf16.mxu0 0
    %340 = vmatpush1.bf16.msra.mxu0 0
    %341 = vmatprep.subr.bf16.mxu0 0
    %342 = vmatpush1.bf16.msra.mxu0 0
    %343 = vmatprep.subr.bf16.mxu0 0
    %344 = vmatpush1.bf16.msra.mxu0 0
    %345 = vmatprep.subr.bf16.mxu0 0
    %346 = vmatpush1.bf16.msra.mxu0 0
    %347 = vmatprep.subr.bf16.mxu0 0
    %348 = vmatpush1.bf16.msra.mxu0 0
    %349 = vmatprep.subr.bf16.mxu0 0
    %350 = vmatpush1.bf16.msra.mxu0 0
    %351 = vmatprep.subr.bf16.mxu0 0
    %352 = vmatpush1.bf16.msra.mxu0 0
    %353 = vmatprep.subr.bf16.mxu0 0
    %354 = vmatpush1.bf16.msra.mxu0 0
    %355 = vmatprep.subr.bf16.mxu0 0
    %356 = vmatpush1.bf16.msra.mxu0 0
    %357 = vmatprep.subr.bf16.mxu0 0
    %358 = vmatpush1.bf16.msra.mxu0 0
    %359 = vmatprep.subr.bf16.mxu0 0
    %360 = vmatpush1.bf16.msra.mxu0 0
    %361 = vmatprep.subr.bf16.mxu0 0
    %362 = vmatpush1.bf16.msra.mxu0 0
    %363 = vmatprep.mubr.bf16.mxu0 0
    %364 = vmatmul.mubr.bf16.gmra.mrb[0].mxu0 %v320
    %v365 = vpop.f32.mrb[0].mxu0
    %v366 = vadd.f32 %v261, %v365
    %v367 = vpop.f32.mrb[0].mxu0
    %v368 = vpop.f32.mrb[0].mxu0
    %v369 = vadd.f32 %v266, %v368
    %v370 = vpop.f32.mrb[0].mxu0
    %371 = vmatprep.mubr.bf16.mxu0 0
    %372 = vmatmul.mubr.bf16.gmra.mrb[0].mxu0 %v323
    %v373 = vpop.f32.mrb[0].mxu0
    %v374 = vadd.f32 %v271, %v373
    %v375 = vpop.f32.mrb[0].mxu0
    %v376 = vpop.f32.mrb[0].mxu0
    %v377 = vadd.f32 %v276, %v376
    %v378 = vpop.f32.mrb[0].mxu0
    %379 = vmatprep.mubr.bf16.mxu0 0
    %380 = vmatmul.mubr.bf16.gmra.mrb[0].mxu0 %v326
    %v381 = vpop.f32.mrb[0].mxu0
    %v382 = vadd.f32 %v281, %v381
    %v383 = vpop.f32.mrb[0].mxu0
    %v384 = vpop.f32.mrb[0].mxu0
    %v385 = vadd.f32 %v286, %v384
    %v386 = vpop.f32.mrb[0].mxu0
    %387 = vmatprep.mubr.bf16.mxu0 0
    %388 = vmatmul.mubr.bf16.gmra.mrb[0].mxu0 %v329
    %v389 = vpop.f32.mrb[0].mxu0
    %v390 = vadd.f32 %v291, %v389
    %v391 = vpop.f32.mrb[0].mxu0
    %v392 = vpop.f32.mrb[0].mxu0
    %v393 = vadd.f32 %v296, %v392
    %v394 = vpop.f32.mrb[0].mxu0
    %395 = vdwg.mxu0
    %v396 = vmax.f32 %v366, 0.0
    %v397 = vmax.f32 %v369, 0.0
    %v398 = vmax.f32 %v374, 0.0
    %v399 = vmax.f32 %v377, 0.0
    %v400 = vmax.f32 %v382, 0.0
    %v401 = vmax.f32 %v385, 0.0
    %v402 = vmax.f32 %v390, 0.0
    %v403 = vmax.f32 %v393, 0.0
    %v404 = vpack.c.bf16 %v397, %v396
    %v405 = vpack.c.bf16 %v399, %v398
    %v406 = vpack.c.bf16 %v401, %v400
    %v407 = vpack.c.bf16 %v403, %v402
    %v408 = vld [vmem:[%s5] sm:$0xf]
    %v409 = vld [vmem:[%s6] sm:$0xff]
    %411 = vset.pattern.permute.xlu0 0
    %412 = vperm.xlu0 %411, %v409
    %v413 = vpop.permute.xlu0 %412
    %v416 = vsel %vm318, %v408, 0
    %418 = vmatprep.subr.bf16.mxu0 0
    %419 = vmatpush1.bf16.msra.mxu0 %v404
    %420 = vmatprep.subr.bf16.mxu0 0
    %421 = vmatpush1.bf16.msra.mxu0 %v405
    %422 = vmatprep.subr.bf16.mxu0 0
    %423 = vmatpush1.bf16.msra.mxu0 %v406
    %424 = vmatprep.subr.bf16.mxu0 0
    %425 = vmatpush1.bf16.msra.mxu0 %v407
    %426 = vmatprep.subr.bf16.mxu0 0
    %427 = vmatpush1.bf16.msra.mxu0 0
    %428 = vmatprep.subr.bf16.mxu0 0
    %429 = vmatpush1.bf16.msra.mxu0 0
    %430 = vmatprep.subr.bf16.mxu0 0
    %431 = vmatpush1.bf16.msra.mxu0 0
    %432 = vmatprep.subr.bf16.mxu0 0
    %433 = vmatpush1.bf16.msra.mxu0 0
    %434 = vmatprep.subr.bf16.mxu0 0
    %435 = vmatpush1.bf16.msra.mxu0 0
    %436 = vmatprep.subr.bf16.mxu0 0
    %437 = vmatpush1.bf16.msra.mxu0 0
    %438 = vmatprep.subr.bf16.mxu0 0
    %439 = vmatpush1.bf16.msra.mxu0 0
    %440 = vmatprep.subr.bf16.mxu0 0
    %441 = vmatpush1.bf16.msra.mxu0 0
    %442 = vmatprep.subr.bf16.mxu0 0
    %443 = vmatpush1.bf16.msra.mxu0 0
    %444 = vmatprep.subr.bf16.mxu0 0
    %445 = vmatpush1.bf16.msra.mxu0 0
    %446 = vmatprep.subr.bf16.mxu0 0
    %447 = vmatpush1.bf16.msra.mxu0 0
    %448 = vmatprep.subr.bf16.mxu0 0
    %449 = vmatpush1.bf16.msra.mxu0 0
    %450 = vmatprep.mubr.bf16.mxu0 0
    %451 = vmatmul.mubr.bf16.gmra.mrb[0].mxu0 %v416
    %v452 = vpop.f32.mrb[0].mxu0
    %v453 = vadd.f32 %v413, %v452
    %v454 = vpop.f32.mrb[0].mxu0
    %v455 = vpop.f32.mrb[0].mxu0
    %v456 = vpop.f32.mrb[0].mxu0
    %457 = vdwg.mxu0
    %458 = vst [vmem:[#allocation2] sm:$0xff] %v453
    // Predicated region
    $region30: #{tpu_custom_call.1} parent=1 // pred_check
      _
    $region31: #{tpu_custom_call.1} parent=1 // pred_check_branch
      %460 = sbr.rel (0) target = $region33
    $region32: #{tpu_custom_call.1} parent=1 // pred_region
      %s462 = ssub.s32 128, 128
      %463 = vsyncadd [#allocation3], %s462
      %s465 = sshll.u32 [#allocation2], 4
      %s466 = int_to_ptr.vmem [resolvable:$true] %s465
      %468 = dma.vmem_to_hbm [thread:$0]  %s466, 128, %s7, [#allocation3]
    $region33: #{tpu_custom_call.1} parent=1 // pred_fallthru
      _
    // Predicated region
    $region34: #{tpu_custom_call.1} parent=1 // pred_check
      _
    $region35: #{tpu_custom_call.1} parent=1 // pred_check_branch
      %470 = sbr.rel (0) target = $region37
    $region36: #{tpu_custom_call.1} parent=1 // pred_region
      %471 = dma.done [#allocation3], 128
    $region37: #{tpu_custom_call.1} parent=1 // pred_fallthru
      _
    %472 = vsyncpa [#allocation3], 1

</llo_original>
